<compile_context>
chip_gen: v7x
topology: tpu7x:2x2x1
jax: 0.10.0
libtpu: 0.0.40
codegen_flags: <defaults>
</compile_context>

<pallas_src>
import functools

import jax
import jax.numpy as jnp
from jax.experimental import pallas as pl
from jax.experimental.pallas import tpu as pltpu


def _split_cat_kernel(x_ref, o_ref, *, split, n):
    # x_ref: (n, rows, 128) in VMEM; o_ref: (2*(n-split)+split, rows, 128).
    # All slices are static and along the leading (untiled) axis, so every
    # load/store is a full-tile, unmasked copy.
    nb = n - split
    b = x_ref[split:n]          # second chunk
    a = x_ref[0:split]          # first chunk
    o_ref[0:nb] = b
    o_ref[nb:2 * nb] = b
    o_ref[2 * nb:2 * nb + split] = a


def split_cat(x2: jax.Array) -> jax.Array:
    """Equivalent of: a, b = split(x2, 2, dim=0); return cat([b, b, a], 0)."""
    n, c, h, w = x2.shape
    split = 2
    # torch.split(x2, 2) unpacked into exactly two names requires exactly two
    # chunks: a = rows [0, split), b = rows [split, n).
    assert split < n <= 2 * split, "need exactly two chunks from split(., 2)"

    f = c * h * w
    assert f % 128 == 0, "feature size must be lane-divisible (multiple of 128)"
    rows, lanes = f // 128, 128

    x = x2.reshape(n, rows, lanes)          # lane-dense layout, 4 KiB-aligned rows
    nb = n - split
    out_n = 2 * nb + split

    kernel = functools.partial(_split_cat_kernel, split=split, n=n)

    out = pl.pallas_call(
        kernel,
        out_shape=jax.ShapeDtypeStruct((out_n, rows, lanes), x2.dtype),
        grid=(1,),  # single step: whole problem is ~40 KiB, fixed cost dominates
        in_specs=[pl.BlockSpec((n, rows, lanes), lambda i: (0, 0, 0))],
        out_specs=pl.BlockSpec((out_n, rows, lanes), lambda i: (0, 0, 0)),
        compiler_params=pltpu.CompilerParams(
            dimension_semantics=("parallel",)
        ),
    )(x)

    return out.reshape(out_n, c, h, w)


def model_forward(x2: jax.Array):
    """Reproduces Model.forward: runs the split+cat, returns True.

    Note: the reference forward discards v3 and returns True; we also return v3
    so the kernel result can be checked / blocked on.
    """
    v3 = split_cat(x2)
    return True, v3


if __name__ == "__main__":
    # Small deterministic input. The reference global was (1, 4, 32, 32), but
    # unpacking split(., 2) into two names requires batch in (2, 4]; we use
    # batch=4 so the semantics (two chunks of 2) are well defined.
    key = jax.random.PRNGKey(0)
    x2 = jax.random.normal(key, (4, 4, 16, 16), dtype=jnp.float32)

    result, v3 = model_forward(x2)
    v3 = jax.block_until_ready(v3)

    # Reference check with plain jnp.
    a, b = x2[:2], x2[2:]
    ref = jnp.concatenate([b, b, a], axis=0)
    assert v3.shape == ref.shape
    assert bool(jnp.allclose(v3, ref))
    assert result is True

    print("KERNEL_OK")
</pallas_src>

<mosaic_0001>
module attributes {stable_mosaic.version = 11 : i64} {
  func.func @_split_cat_kernel(%arg0: i32, %arg1: memref<4x8x128xf32, #tpu.memory_space<vmem>>, %arg2: memref<6x8x128xf32, #tpu.memory_space<vmem>>) attributes {dimension_semantics = [#tpu.dimension_semantics<parallel>], iteration_bounds = array<i64: 1>, scalar_prefetch = 0 : i64, scratch_operands = 0 : i64, tpu.core_type = #tpu.core_type<tc>, window_params = [{pipeline_mode = #tpu.pipeline_mode<synchronous>, transform_indices = @transform_0, window_bounds = array<i64: 4, 8, 128>}, {pipeline_mode = #tpu.pipeline_mode<synchronous>, transform_indices = @transform_1, window_bounds = array<i64: 6, 8, 128>}]} {
    %c2 = arith.constant 2 : index
    %c0 = arith.constant 0 : index
    %c0_0 = arith.constant 0 : index
    %0 = vector.load %arg1[%c2, %c0, %c0_0] : memref<4x8x128xf32, #tpu.memory_space<vmem>>, vector<2x8x128xf32>
    %c0_1 = arith.constant 0 : index
    %c0_2 = arith.constant 0 : index
    %c0_3 = arith.constant 0 : index
    %1 = vector.load %arg1[%c0_1, %c0_2, %c0_3] : memref<4x8x128xf32, #tpu.memory_space<vmem>>, vector<2x8x128xf32>
    %c0_4 = arith.constant 0 : index
    %c0_5 = arith.constant 0 : index
    %c0_6 = arith.constant 0 : index
    %2 = vector.load %arg2[%c0_4, %c0_5, %c0_6] : memref<6x8x128xf32, #tpu.memory_space<vmem>>, vector<2x8x128xf32>
    tpu.vector_store %arg2[%c0_4, %c0_5, %c0_6], %0 {strides = array<i32>} : memref<6x8x128xf32, #tpu.memory_space<vmem>>, vector<2x8x128xf32>,
    %c2_7 = arith.constant 2 : index
    %c0_8 = arith.constant 0 : index
    %c0_9 = arith.constant 0 : index
    %3 = vector.load %arg2[%c2_7, %c0_8, %c0_9] : memref<6x8x128xf32, #tpu.memory_space<vmem>>, vector<2x8x128xf32>
    tpu.vector_store %arg2[%c2_7, %c0_8, %c0_9], %0 {strides = array<i32>} : memref<6x8x128xf32, #tpu.memory_space<vmem>>, vector<2x8x128xf32>,
    %c4 = arith.constant 4 : index
    %c0_10 = arith.constant 0 : index
    %c0_11 = arith.constant 0 : index
    %4 = vector.load %arg2[%c4, %c0_10, %c0_11] : memref<6x8x128xf32, #tpu.memory_space<vmem>>, vector<2x8x128xf32>
    tpu.vector_store %arg2[%c4, %c0_10, %c0_11], %1 {strides = array<i32>} : memref<6x8x128xf32, #tpu.memory_space<vmem>>, vector<2x8x128xf32>,
    return
  }
  func.func @transform_0(%arg0: i32) -> (i32, i32, i32) {
    %c0_i32 = arith.constant 0 : i32
    %c0_i32_0 = arith.constant 0 : i32
    %c0_i32_1 = arith.constant 0 : i32
    %c0_i32_2 = arith.constant 0 : i32
    return %c0_i32, %c0_i32_0, %c0_i32_1 : i32, i32, i32
  }
  func.func @transform_1(%arg0: i32) -> (i32, i32, i32) {
    %c0_i32 = arith.constant 0 : i32
    %c0_i32_0 = arith.constant 0 : i32
    %c0_i32_1 = arith.constant 0 : i32
    %c0_i32_2 = arith.constant 0 : i32
    return %c0_i32, %c0_i32_0, %c0_i32_1 : i32, i32, i32
  }
}

</mosaic_0001>

<llo_original>
// kernel: tpu_custom_call.1
$region0: #{tpu_custom_call.1}
  #allocation0 [shape = 'u32[]', space=smem, size = 0x4, offset = 0x4, fixed_abs, tag = 'smem constant byte address 0x4 - core index']
  #allocation1 [shape = 'u32[144,128]{1,0:T(1,128)}', space=vmem, size = 0x12000, scoped, tag = 'internal scratch']
  %s0 = inlined_call_operand.hbm [shape: f32[4,8,128], index: 0, kind: input, shape index: {}]
  %s1 = inlined_call_operand.hbm [shape: f32[6,8,128], index: 1, kind: output, shape index: {}]
  %s2 = sld [smem:[#allocation0]]
  $region18: #{tpu_custom_call.1} parent=0
    _
  %s4 = ssub.s32 1, %s2
  %s5 = scalar_select 0, %s4, %s2
  $region1: #{tpu_custom_call.1} parent=0
    #allocation2 [shape = 'u8[16384]{0}', space=vmem, size = 0x4000, scoped, tag = 'input window, operand 0, single buffered']
    #allocation3 [shape = 's32[1]{0}', space=sflag, size = 0x4, scoped, tag = 'scoped memory for tpu_custom_call.1']
    #allocation4 [shape = 's32[1]{0}', space=sflag, size = 0x4, scoped, tag = 'scoped memory for tpu_custom_call.1']
    #allocation5 [shape = 'u8[24576]{0}', space=vmem, size = 0x6000, scoped, tag = 'output window, operand 0, single buffered']
    %6 = vsyncpa [#allocation3], 0
    %7 = vsyncpa [#allocation4], 0
    // Predicated region
    $region2: #{tpu_custom_call.1} parent=1 // pred_check
      _
    $region3: #{tpu_custom_call.1} parent=1 // pred_check_branch
      %9 = sbr.rel (0) target = $region5
    $region4: #{tpu_custom_call.1} parent=1 // pred_region
      %s11 = ssub.s32 512, 512
      %12 = vsyncadd [#allocation3], %s11
      %s13 = sshll.u32 [#allocation2], 4
      %s14 = int_to_ptr.vmem [resolvable:$true] %s13
      %19 = dma.hbm_to_vmem [thread:$0]  %s0, 512, %s14, [#allocation3], 128, 128, 8
    $region5: #{tpu_custom_call.1} parent=1 // pred_fallthru
      _
    // Predicated region
    $region6: #{tpu_custom_call.1} parent=1 // pred_check
      _
    $region7: #{tpu_custom_call.1} parent=1 // pred_check_branch
      %21 = sbr.rel (0) target = $region9
    $region8: #{tpu_custom_call.1} parent=1 // pred_region
      %22 = dma.done [#allocation3], 512
    $region9: #{tpu_custom_call.1} parent=1 // pred_fallthru
      _
    %s23 = scalar_lea.vmem [#allocation2], 16
    %v24 = vld [vmem:[%s23] sm:$0xff]
    %v25 = vld [vmem:[%s23 + $0x8] sm:$0xff]
    %v26 = vld [vmem:[#allocation2] sm:$0xff]
    %v27 = vld [vmem:[#allocation2 + $0x8] sm:$0xff]
    %28 = vst [vmem:[#allocation5] sm:$0xff] %v24
    %29 = vst [vmem:[#allocation5 + $0x8] sm:$0xff] %v25
    %s30 = scalar_lea.vmem [#allocation5], 16
    %31 = vst [vmem:[%s30] sm:$0xff] %v24
    %32 = vst [vmem:[%s30 + $0x8] sm:$0xff] %v25
    %s33 = scalar_lea.vmem [#allocation5], 32
    %34 = vst [vmem:[%s33] sm:$0xff] %v26
    %35 = vst [vmem:[%s33 + $0x8] sm:$0xff] %v27
    // Predicated region
    $region10: #{tpu_custom_call.1} parent=1 // pred_check
      _
    $region11: #{tpu_custom_call.1} parent=1 // pred_check_branch
      %37 = sbr.rel (0) target = $region13
    $region12: #{tpu_custom_call.1} parent=1 // pred_region
      %s39 = ssub.s32 768, 768
      %40 = vsyncadd [#allocation4], %s39
      %s41 = sshll.u32 [#allocation5], 4
      %s42 = int_to_ptr.vmem [resolvable:$true] %s41
      %47 = dma.vmem_to_hbm [thread:$0]  %s42, 768, %s1, [#allocation4], 128, 128, 8
    $region13: #{tpu_custom_call.1} parent=1 // pred_fallthru
      _
    // Predicated region
    $region14: #{tpu_custom_call.1} parent=1 // pred_check
      _
    $region15: #{tpu_custom_call.1} parent=1 // pred_check_branch
      %49 = sbr.rel (0) target = $region17
    $region16: #{tpu_custom_call.1} parent=1 // pred_region
      %50 = dma.done [#allocation4], 768
    $region17: #{tpu_custom_call.1} parent=1 // pred_fallthru
      _
    %51 = vsyncpa [#allocation3], 1
    %52 = vsyncpa [#allocation4], 1

</llo_original>
